<compile_context>
chip_gen: v6e
topology: v6e:2x2x1
jax: 0.10.0
libtpu: 0.0.40
codegen_flags: <defaults>
</compile_context>

<pallas_src>
import jax
import jax.numpy as jnp
from jax.experimental import pallas as pl
from jax.experimental.pallas import tpu as pltpu


def vnet_kernel(idx_ref, embT_ref, w1_ref, b1_ref, w2_ref, b2_ref, out_ref):
    # idx_ref:  (1, 1, TB) int32        embT_ref: (H, V)  f32   (embedding, transposed)
    # w1_ref:   (H, H) f32 (PyTorch (out,in) layout)   b1_ref: (H, 1) f32
    # w2_ref:   (1, H) f32 (PyTorch (out,in) layout)   b2_ref: (1,)   f32 in SMEM
    # out_ref:  (1, 1, TB) f32  -- lane-dense output row

    # ---- Fold the MLP into a (1, V) per-state value table (tiny, per-step) ----
    hV = jnp.dot(w1_ref[...], embT_ref[...],
                 preferred_element_type=jnp.float32)              # (H, V)
    hV = jnp.maximum(hV + b1_ref[...], 0.0)                       # (H, V)
    table = jnp.dot(w2_ref[...], hV,
                    preferred_element_type=jnp.float32) + b2_ref[0]   # (1, V)

    # ---- Exact one-hot selection of table columns, batch on the lane axis ----
    idx = idx_ref[0]                                              # (1, TB) int32
    V = embT_ref.shape[1]
    TB = idx.shape[1]
    vocab_iota = jax.lax.broadcasted_iota(jnp.int32, (V, TB), 0)
    one_hot = (idx == vocab_iota).astype(jnp.float32)             # (V, TB)

    outT = jnp.dot(table, one_hot, preferred_element_type=jnp.float32)  # (1, TB)
    out_ref[...] = outT[None]                                     # (1, 1, TB)


def _round_up(x, m):
    return (x + m - 1) // m * m


def vnetwork_forward(idx, emb, w1_pt, b1, w2_pt, b2, *, tile_b=4096):
    """idx: (B,) integer observation indices.

    emb:   (V, H)  nn.Embedding weight
    w1_pt: (H, H)  first nn.Linear weight in PyTorch (out, in) layout
    b1:    (H,)    first bias
    w2_pt: (1, H)  second nn.Linear weight in PyTorch (out, in) layout
    b2:    (1,)    second bias
    Returns (B, 1) float32 values (same as the PyTorch module).
    """
    B = idx.shape[0]
    H = emb.shape[1]

    # Tile the batch along the lane axis in multiples of 128.
    B128 = _round_up(max(B, 1), 128)
    if B128 <= 128:
        TB = 128                                   # can't split a single vreg row
    else:
        # >=2 grid steps so the ("parallel",) axis can split across both
        # TensorCores on v7x; capped at tile_b to amortize per-step overhead
        # on huge batches.
        TB = min(tile_b, _round_up(-(-B128 // 2), 128))
    B_pad = _round_up(B, TB)
    G = B_pad // TB

    idx32 = idx.astype(jnp.int32)
    if B_pad == B:
        idx_p = idx32.reshape(G, 1, TB)            # aligned: no wrapper pad copy
    else:
        idx_p = jnp.zeros((B_pad,), jnp.int32).at[:B].set(idx32).reshape(G, 1, TB)

    emb_T = emb.T.astype(jnp.float32)              # (H, V)
    w1 = w1_pt.astype(jnp.float32)                 # (H, H)
    b1_c = b1.astype(jnp.float32).reshape(H, 1)    # (H, 1)
    w2 = w2_pt.astype(jnp.float32)                 # (1, H)
    b2_s = b2.astype(jnp.float32).reshape(1)       # (1,) scalar in SMEM

    out = pl.pallas_call(
        vnet_kernel,
        out_shape=jax.ShapeDtypeStruct((G, 1, TB), jnp.float32),
        grid=(G,),
        in_specs=[
            pl.BlockSpec((1, 1, TB), lambda i: (i, 0, 0)),         # idx tile (streamed)
            pl.BlockSpec(memory_space=pltpu.MemorySpace.VMEM),     # emb^T   (resident)
            pl.BlockSpec(memory_space=pltpu.MemorySpace.VMEM),     # W1      (resident)
            pl.BlockSpec(memory_space=pltpu.MemorySpace.VMEM),     # b1      (resident)
            pl.BlockSpec(memory_space=pltpu.MemorySpace.VMEM),     # W2      (resident)
            pl.BlockSpec(memory_space=pltpu.MemorySpace.SMEM),     # b2 scalar
        ],
        out_specs=pl.BlockSpec((1, 1, TB), lambda i: (i, 0, 0)),   # lane-dense row
        compiler_params=pltpu.CompilerParams(
            dimension_semantics=("parallel",)),                    # megacore on v7x
    )(idx_p, emb_T, w1, b1_c, w2, b2_s)

    out_flat = out.reshape(B_pad)
    if B_pad != B:
        out_flat = out_flat[:B]                    # only slice when padded
    return out_flat.reshape(B, 1)


def xavier_uniform(key, shape):
    # nn.init.xavier_uniform_ for a (fan_out, fan_in) PyTorch weight.
    fan_out, fan_in = shape
    limit = (6.0 / (fan_in + fan_out)) ** 0.5
    return jax.random.uniform(key, shape, jnp.float32, -limit, limit)


if __name__ == "__main__":
    obs_vocab_size = 16   # FrozenLake-v1 4x4 grid
    n_hidden = 32
    batch = 8

    key = jax.random.PRNGKey(0)
    k_emb, k_w1, k_b1, k_w2, k_b2, k_idx, k_idx2 = jax.random.split(key, 7)

    # nn.Embedding default init: N(0, 1)
    emb = jax.random.normal(k_emb, (obs_vocab_size, n_hidden), jnp.float32)

    # nn.Linear weights (xavier_uniform per init_weights), biases uniform(+-1/sqrt(fan_in))
    w1_pt = xavier_uniform(k_w1, (n_hidden, n_hidden))        # (out, in) PyTorch layout
    b1 = jax.random.uniform(k_b1, (n_hidden,), jnp.float32,
                            -1.0 / n_hidden ** 0.5, 1.0 / n_hidden ** 0.5)
    w2_pt = xavier_uniform(k_w2, (1, n_hidden))
    b2 = jax.random.uniform(k_b2, (1,), jnp.float32,
                            -1.0 / n_hidden ** 0.5, 1.0 / n_hidden ** 0.5)

    def ref_forward(i):
        x_ref = emb[i]
        h_ref = jnp.maximum(x_ref @ w1_pt.T + b1, 0.0)
        return h_ref @ w2_pt.T + b2

    # Small batch (padded-tile path, G=1)
    idx = jax.random.randint(k_idx, (batch,), 0, obs_vocab_size, jnp.int32)
    out = jax.block_until_ready(vnetwork_forward(idx, emb, w1_pt, b1, w2_pt, b2))
    assert out.shape == (batch, 1)
    assert jnp.allclose(out, ref_forward(idx), atol=1e-4, rtol=1e-4)

    # Aligned batch (no-pad fast path, G=2 -> both TCs on v7x)
    idx2 = jax.random.randint(k_idx2, (256,), 0, obs_vocab_size, jnp.int32)
    out2 = jax.block_until_ready(vnetwork_forward(idx2, emb, w1_pt, b1, w2_pt, b2))
    assert out2.shape == (256, 1)
    assert jnp.allclose(out2, ref_forward(idx2), atol=1e-4, rtol=1e-4)

    print("KERNEL_OK")
</pallas_src>

<mosaic_0001>
module attributes {stable_mosaic.version = 11 : i64} {
  func.func @vnet_kernel(%arg0: i32, %arg1: memref<1x1x128xi32, #tpu.memory_space<vmem>>, %arg2: memref<32x16xf32, #tpu.memory_space<vmem>>, %arg3: memref<32x32xf32, #tpu.memory_space<vmem>>, %arg4: memref<32x1xf32, #tpu.memory_space<vmem>>, %arg5: memref<1x32xf32, #tpu.memory_space<vmem>>, %arg6: memref<1xf32, #tpu.memory_space<smem>>, %arg7: memref<1x1x128xf32, #tpu.memory_space<vmem>>) attributes {dimension_semantics = [#tpu.dimension_semantics<parallel>], iteration_bounds = array<i64: 1>, scalar_prefetch = 0 : i64, scratch_operands = 0 : i64, tpu.core_type = #tpu.core_type<tc>, window_params = [{transform_indices = @transform_0, window_bounds = array<i64: 1, 1, 128>}, {pipeline_mode = #tpu.pipeline_mode<synchronous>, transform_indices = @transform_1, window_bounds = array<i64: 32, 16>}, {pipeline_mode = #tpu.pipeline_mode<synchronous>, transform_indices = @transform_2, window_bounds = array<i64: 32, 32>}, {pipeline_mode = #tpu.pipeline_mode<synchronous>, transform_indices = @transform_3, window_bounds = array<i64: 32, 1>}, {pipeline_mode = #tpu.pipeline_mode<synchronous>, transform_indices = @transform_4, window_bounds = array<i64: 1, 32>}, {transform_indices = @transform_5, window_bounds = array<i64: 1>}, {transform_indices = @transform_6, window_bounds = array<i64: 1, 1, 128>}]} {
    %c0 = arith.constant 0 : index
    %c0_0 = arith.constant 0 : index
    %0 = vector.load %arg3[%c0, %c0_0] : memref<32x32xf32, #tpu.memory_space<vmem>>, vector<32x32xf32>
    %c0_1 = arith.constant 0 : index
    %c0_2 = arith.constant 0 : index
    %1 = vector.load %arg2[%c0_1, %c0_2] : memref<32x16xf32, #tpu.memory_space<vmem>>, vector<32x16xf32>
    %cst = arith.constant dense<0.000000e+00> : vector<32x16xf32>
    %2 = tpu.matmul %0, %1, %cst {dimension_numbers = #tpu.dot_dimension_numbers<[1], [0], [0], [1], [0, 0, 1, 1], [], []>} : vector<32x32xf32>, vector<32x16xf32>, vector<32x16xf32> -> vector<32x16xf32>
    %c0_3 = arith.constant 0 : index
    %c0_4 = arith.constant 0 : index
    %3 = vector.load %arg4[%c0_3, %c0_4] : memref<32x1xf32, #tpu.memory_space<vmem>>, vector<32x1xf32>
    %4 = vector.broadcast %3 : vector<32x1xf32> to vector<32x16xf32>
    %5 = arith.addf %2, %4 : vector<32x16xf32>
    %cst_5 = arith.constant 0.000000e+00 : f32
    %6 = vector.broadcast %cst_5 : f32 to vector<32x16xf32>
    %7 = arith.maximumf %5, %6 : vector<32x16xf32>
    %c0_6 = arith.constant 0 : index
    %c0_7 = arith.constant 0 : index
    %8 = vector.load %arg5[%c0_6, %c0_7] : memref<1x32xf32, #tpu.memory_space<vmem>>, vector<1x32xf32>
    %cst_8 = arith.constant dense<0.000000e+00> : vector<1x16xf32>
    %9 = tpu.matmul %8, %7, %cst_8 {dimension_numbers = #tpu.dot_dimension_numbers<[1], [0], [0], [1], [0, 0, 1, 1], [], []>} : vector<1x32xf32>, vector<32x16xf32>, vector<1x16xf32> -> vector<1x16xf32>
    %c0_9 = arith.constant 0 : index
    %10 = memref.load %arg6[%c0_9] : memref<1xf32, #tpu.memory_space<smem>>
    %11 = vector.broadcast %10 : f32 to vector<1x16xf32>
    %12 = arith.addf %9, %11 : vector<1x16xf32>
    %c0_10 = arith.constant 0 : index
    %c0_11 = arith.constant 0 : index
    %c0_12 = arith.constant 0 : index
    %13 = vector.load %arg1[%c0_10, %c0_11, %c0_12] : memref<1x1x128xi32, #tpu.memory_space<vmem>>, vector<1x1x128xi32>
    %14 = vector.shape_cast %13 : vector<1x1x128xi32> to vector<1x128xi32>
    %15 = tpu.iota {dimensions = array<i32: 0>} : vector<16x128xi32>
    %16 = vector.broadcast %14 : vector<1x128xi32> to vector<16x128xi32>
    %17 = arith.cmpi eq, %16, %15 : vector<16x128xi32>
    %18 = arith.extui %17 : vector<16x128xi1> to vector<16x128xi32>
    %19 = arith.sitofp %18 : vector<16x128xi32> to vector<16x128xf32>
    %cst_13 = arith.constant dense<0.000000e+00> : vector<1x128xf32>
    %20 = tpu.matmul %12, %19, %cst_13 {dimension_numbers = #tpu.dot_dimension_numbers<[1], [0], [0], [1], [0, 0, 1, 1], [], []>} : vector<1x16xf32>, vector<16x128xf32>, vector<1x128xf32> -> vector<1x128xf32>
    %21 = vector.shape_cast %20 : vector<1x128xf32> to vector<1x1x128xf32>
    %c0_14 = arith.constant 0 : index
    %c0_15 = arith.constant 0 : index
    %c0_16 = arith.constant 0 : index
    %22 = vector.load %arg7[%c0_14, %c0_15, %c0_16] : memref<1x1x128xf32, #tpu.memory_space<vmem>>, vector<1x1x128xf32>
    tpu.vector_store %arg7[%c0_14, %c0_15, %c0_16], %21 {strides = array<i32>} : memref<1x1x128xf32, #tpu.memory_space<vmem>>, vector<1x1x128xf32>,
    return
  }
  func.func @transform_0(%arg0: i32) -> (i32, i32, i32) {
    %c0_i32 = arith.constant 0 : i32
    %c0_i32_0 = arith.constant 0 : i32
    %c0_i32_1 = arith.constant 0 : i32
    return %arg0, %c0_i32, %c0_i32_0 : i32, i32, i32
  }
  func.func @transform_1(%arg0: i32) -> (i32, i32) {
    %c0_i32 = arith.constant 0 : i32
    %c0_i32_0 = arith.constant 0 : i32
    %c0_i32_1 = arith.constant 0 : i32
    return %c0_i32, %c0_i32_0 : i32, i32
  }
  func.func @transform_2(%arg0: i32) -> (i32, i32) {
    %c0_i32 = arith.constant 0 : i32
    %c0_i32_0 = arith.constant 0 : i32
    %c0_i32_1 = arith.constant 0 : i32
    return %c0_i32, %c0_i32_0 : i32, i32
  }
  func.func @transform_3(%arg0: i32) -> (i32, i32) {
    %c0_i32 = arith.constant 0 : i32
    %c0_i32_0 = arith.constant 0 : i32
    %c0_i32_1 = arith.constant 0 : i32
    return %c0_i32, %c0_i32_0 : i32, i32
  }
  func.func @transform_4(%arg0: i32) -> (i32, i32) {
    %c0_i32 = arith.constant 0 : i32
    %c0_i32_0 = arith.constant 0 : i32
    %c0_i32_1 = arith.constant 0 : i32
    return %c0_i32, %c0_i32_0 : i32, i32
  }
  func.func @transform_5(%arg0: i32) -> i32 {
    %c0_i32 = arith.constant 0 : i32
    %c0_i32_0 = arith.constant 0 : i32
    return %c0_i32 : i32
  }
  func.func @transform_6(%arg0: i32) -> (i32, i32, i32) {
    %c0_i32 = arith.constant 0 : i32
    %c0_i32_0 = arith.constant 0 : i32
    %c0_i32_1 = arith.constant 0 : i32
    return %arg0, %c0_i32, %c0_i32_0 : i32, i32, i32
  }
}

</mosaic_0001>

<llo_original>
// kernel: tpu_custom_call.1
$region0: #{tpu_custom_call.1}
  #allocation0 [shape = 'u32[]', space=smem, size = 0x4, offset = 0x4, fixed_abs, tag = 'smem constant byte address 0x4 - core index']
  #allocation1 [shape = 'u32[144,128]{1,0:T(1,128)}', space=vmem, size = 0x12000, scoped, tag = 'internal scratch']
  #allocation2 [shape = 'f32[1]{0:T(128)S(6)}', space=smem, size = 0x200, scoped, tag = 'scoped memory for tpu_custom_call.1']
  %s0 = inlined_call_operand.vmem [shape: s32[1,1,128], index: 0, kind: input, shape index: {}]
  %s1 = inlined_call_operand.vmem [shape: f32[32,16], index: 1, kind: input, shape index: {}]
  %s2 = inlined_call_operand.vmem [shape: f32[32,32], index: 2, kind: input, shape index: {}]
  %s3 = inlined_call_operand.vmem [shape: f32[32,1], index: 3, kind: input, shape index: {}]
  %s4 = inlined_call_operand.vmem [shape: f32[1,32], index: 4, kind: input, shape index: {}]
  %s5 = inlined_call_operand.<no memory space> [shape: f32[1], index: 5, kind: input, shape index: {}]
  %s6 = inlined_call_operand.hbm [shape: f32[1,1,128], index: 6, kind: output, shape index: {}]
  %s7 = sld [smem:[#allocation0]]
  $region34: #{tpu_custom_call.1} parent=0
    _
  %s9 = ssub.s32 1, %s7
  %s10 = scalar_select 0, %s9, %s7
  %11 = sst [smem:[#allocation2]] %s5
  $region1: #{tpu_custom_call.1} parent=0
    #allocation3 [shape = 'u8[512]{0}', space=vmem, size = 0x400, scoped, tag = 'output window, operand 0, single buffered']
    #allocation4 [shape = 's32[1]{0}', space=sflag, size = 0x4, scoped, tag = 'scoped memory for tpu_custom_call.1']
    %12 = vsyncpa [#allocation4], 0
    // Predicated region
    $region2: #{tpu_custom_call.1} parent=1 // pred_check
      _
    $region3: #{tpu_custom_call.1} parent=1 // pred_check_branch
      %14 = sbr.rel (0) target = $region5
    $region4: #{tpu_custom_call.1} parent=1 // pred_region
      _
    $region5: #{tpu_custom_call.1} parent=1 // pred_fallthru
      _
    // Predicated region
    $region6: #{tpu_custom_call.1} parent=1 // pred_check
      _
    $region7: #{tpu_custom_call.1} parent=1 // pred_check_branch
      %16 = sbr.rel (0) target = $region9
    $region8: #{tpu_custom_call.1} parent=1 // pred_region
      _
    $region9: #{tpu_custom_call.1} parent=1 // pred_fallthru
      _
    // Predicated region
    $region10: #{tpu_custom_call.1} parent=1 // pred_check
      _
    $region11: #{tpu_custom_call.1} parent=1 // pred_check_branch
      %18 = sbr.rel (0) target = $region13
    $region12: #{tpu_custom_call.1} parent=1 // pred_region
      _
    $region13: #{tpu_custom_call.1} parent=1 // pred_fallthru
      _
    // Predicated region
    $region14: #{tpu_custom_call.1} parent=1 // pred_check
      _
    $region15: #{tpu_custom_call.1} parent=1 // pred_check_branch
      %20 = sbr.rel (0) target = $region17
    $region16: #{tpu_custom_call.1} parent=1 // pred_region
      _
    $region17: #{tpu_custom_call.1} parent=1 // pred_fallthru
      _
    // Predicated region
    $region18: #{tpu_custom_call.1} parent=1 // pred_check
      _
    $region19: #{tpu_custom_call.1} parent=1 // pred_check_branch
      %22 = sbr.rel (0) target = $region21
    $region20: #{tpu_custom_call.1} parent=1 // pred_region
      _
    $region21: #{tpu_custom_call.1} parent=1 // pred_fallthru
      _
    // Predicated region
    $region22: #{tpu_custom_call.1} parent=1 // pred_check
      _
    $region23: #{tpu_custom_call.1} parent=1 // pred_check_branch
      %24 = sbr.rel (0) target = $region25
    $region24: #{tpu_custom_call.1} parent=1 // pred_region
      _
    $region25: #{tpu_custom_call.1} parent=1 // pred_fallthru
      _
    %v25 = vld [vmem:[%s2] sm:$0xff]
    %v26 = vld [vmem:[%s2 + $0x8] sm:$0xff]
    %v27 = vld [vmem:[%s2 + $0x10] sm:$0xff]
    %v28 = vld [vmem:[%s2 + $0x18] sm:$0xff]
    %v29 = vld [vmem:[%s1] sm:$0xff]
    %v30 = vld [vmem:[%s1 + $0x8] sm:$0xff]
    %v31 = vld [vmem:[%s1 + $0x10] sm:$0xff]
    %v32 = vld [vmem:[%s1 + $0x18] sm:$0xff]
    %v33 = vld [vmem:[%s3] sm:$0xff]
    %v34 = vld [vmem:[%s3 + $0x8] sm:$0xff]
    %v35 = vld [vmem:[%s3 + $0x10] sm:$0xff]
    %v36 = vld [vmem:[%s3 + $0x18] sm:$0xff]
    %38 = vset.pattern.permute.xlu0 0
    %39 = vperm.xlu0 %38, %v33
    %v40 = vpop.permute.xlu0 %39
    %43 = vset.pattern.permute.xlu0 0
    %44 = vperm.xlu0 %43, %v34
    %v45 = vpop.permute.xlu0 %44
    %48 = vset.pattern.permute.xlu0 0
    %49 = vperm.xlu0 %48, %v35
    %v50 = vpop.permute.xlu0 %49
    %53 = vset.pattern.permute.xlu0 0
    %54 = vperm.xlu0 %53, %v36
    %v55 = vpop.permute.xlu0 %54
    %vm57 = vcmask 261120
    %v59 = vsel %vm57, %v25, 0
    %v62 = vsel %vm57, %v26, 0
    %v65 = vsel %vm57, %v27, 0
    %v68 = vsel %vm57, %v28, 0
    %70 = vmatprep.subr.mxu0 0.0
    %71 = vmatpush1.msra.mxu0 0.0
    %72 = vmatprep.subr.mxu0 0.0
    %73 = vmatpush1.msra.mxu0 0.0
    %74 = vmatprep.subr.mxu0 0.0
    %75 = vmatpush1.msra.mxu0 0.0
    %76 = vmatprep.subr.mxu0 0.0
    %77 = vmatpush1.msra.mxu0 0.0
    %78 = vmatprep.subr.mxu0 0.0
    %79 = vmatpush1.msra.mxu0 0.0
    %80 = vmatprep.subr.mxu0 0.0
    %81 = vmatpush1.msra.mxu0 0.0
    %82 = vmatprep.subr.mxu0 0.0
    %83 = vmatpush1.msra.mxu0 0.0
    %84 = vmatprep.subr.mxu0 0.0
    %85 = vmatpush1.msra.mxu0 0.0
    %86 = vmatprep.subr.mxu0 0.0
    %87 = vmatpush1.msra.mxu0 0.0
    %88 = vmatprep.subr.mxu0 0.0
    %89 = vmatpush1.msra.mxu0 0.0
    %90 = vmatprep.subr.mxu0 0.0
    %91 = vmatpush1.msra.mxu0 0.0
    %92 = vmatprep.subr.mxu0 0.0
    %93 = vmatpush1.msra.mxu0 0.0
    %94 = vmatprep.subr.mxu0 0.0
    %95 = vmatpush1.msra.mxu0 %v32
    %96 = vmatprep.subr.mxu0 0.0
    %97 = vmatpush1.msra.mxu0 %v31
    %98 = vmatprep.subr.mxu0 0.0
    %99 = vmatpush1.msra.mxu0 %v30
    %100 = vmatprep.subr.mxu0 0.0
    %101 = vmatpush1.msra.mxu0 %v29
    %102 = vmatprep.subr.mxu0 0.0
    %103 = vmatpush2.msra.mxu0 0.0
    %104 = vmatprep.subr.mxu0 0.0
    %105 = vmatpush2.msra.mxu0 0.0
    %106 = vmatprep.subr.mxu0 0.0
    %107 = vmatpush2.msra.mxu0 0.0
    %108 = vmatprep.subr.mxu0 0.0
    %109 = vmatpush2.msra.mxu0 0.0
    %110 = vmatprep.subr.mxu0 0.0
    %111 = vmatpush2.msra.mxu0 0.0
    %112 = vmatprep.subr.mxu0 0.0
    %113 = vmatpush2.msra.mxu0 0.0
    %114 = vmatprep.subr.mxu0 0.0
    %115 = vmatpush2.msra.mxu0 0.0
    %116 = vmatprep.subr.mxu0 0.0
    %117 = vmatpush2.msra.mxu0 0.0
    %118 = vmatprep.subr.mxu0 0.0
    %119 = vmatpush2.msra.mxu0 0.0
    %120 = vmatprep.subr.mxu0 0.0
    %121 = vmatpush2.msra.mxu0 0.0
    %122 = vmatprep.subr.mxu0 0.0
    %123 = vmatpush2.msra.mxu0 0.0
    %124 = vmatprep.subr.mxu0 0.0
    %125 = vmatpush2.msra.mxu0 0.0
    %126 = vmatprep.subr.mxu0 0.0
    %127 = vmatpush2.msra.mxu0 0.0
    %128 = vmatprep.subr.mxu0 0.0
    %129 = vmatpush2.msra.mxu0 0.0
    %130 = vmatprep.subr.mxu0 0.0
    %131 = vmatpush2.msra.mxu0 0.0
    %132 = vmatprep.subr.mxu0 0.0
    %133 = vmatpush2.msra.mxu0 0.0
    %134 = vmatprep.mubr.f32.mxu0 0.0
    %135 = vmatmul.mubr.f32.gmra.mxu0 %v59
    %v136 = vpop.f32.mrf.mxu0
    %v137 = vadd.f32 %v40, %v136
    %v138 = vpop.f32.mrf.mxu0
    %139 = vmatprep.mubr.f32.mxu0 0.0
    %140 = vmatmul.mubr.f32.gmra.mxu0 %v62
    %v141 = vpop.f32.mrf.mxu0
    %v142 = vadd.f32 %v45, %v141
    %v143 = vpop.f32.mrf.mxu0
    %144 = vmatprep.mubr.f32.mxu0 0.0
    %145 = vmatmul.mubr.f32.gmra.mxu0 %v65
    %v146 = vpop.f32.mrf.mxu0
    %v147 = vadd.f32 %v50, %v146
    %v148 = vpop.f32.mrf.mxu0
    %149 = vmatprep.mubr.f32.mxu0 0.0
    %150 = vmatmul.mubr.f32.gmra.mxu0 %v68
    %v151 = vpop.f32.mrf.mxu0
    %v152 = vadd.f32 %v55, %v151
    %v153 = vpop.f32.mrf.mxu0
    %154 = vdwg.mxu0
    %v155 = vmax.f32 %v137, 0.0
    %v156 = vmax.f32 %v142, 0.0
    %v157 = vmax.f32 %v147, 0.0
    %v158 = vmax.f32 %v152, 0.0
    %v159 = vld [vmem:[%s4] sm:$0x1]
    %s160 = sld [smem:[#allocation2]]
    %v161 = vstv %s160
    %v163 = vsel %vm57, %v159, 0
    %165 = vmatprep.subr.mxu0 0.0
    %166 = vmatpush1.msra.mxu0 0.0
    %167 = vmatprep.subr.mxu0 0.0
    %168 = vmatpush1.msra.mxu0 0.0
    %169 = vmatprep.subr.mxu0 0.0
    %170 = vmatpush1.msra.mxu0 0.0
    %171 = vmatprep.subr.mxu0 0.0
    %172 = vmatpush1.msra.mxu0 0.0
    %173 = vmatprep.subr.mxu0 0.0
    %174 = vmatpush1.msra.mxu0 0.0
    %175 = vmatprep.subr.mxu0 0.0
    %176 = vmatpush1.msra.mxu0 0.0
    %177 = vmatprep.subr.mxu0 0.0
    %178 = vmatpush1.msra.mxu0 0.0
    %179 = vmatprep.subr.mxu0 0.0
    %180 = vmatpush1.msra.mxu0 0.0
    %181 = vmatprep.subr.mxu0 0.0
    %182 = vmatpush1.msra.mxu0 0.0
    %183 = vmatprep.subr.mxu0 0.0
    %184 = vmatpush1.msra.mxu0 0.0
    %185 = vmatprep.subr.mxu0 0.0
    %186 = vmatpush1.msra.mxu0 0.0
    %187 = vmatprep.subr.mxu0 0.0
    %188 = vmatpush1.msra.mxu0 0.0
    %189 = vmatprep.subr.mxu0 0.0
    %190 = vmatpush1.msra.mxu0 %v158
    %191 = vmatprep.subr.mxu0 0.0
    %192 = vmatpush1.msra.mxu0 %v157
    %193 = vmatprep.subr.mxu0 0.0
    %194 = vmatpush1.msra.mxu0 %v156
    %195 = vmatprep.subr.mxu0 0.0
    %196 = vmatpush1.msra.mxu0 %v155
    %197 = vmatprep.subr.mxu0 0.0
    %198 = vmatpush2.msra.mxu0 0.0
    %199 = vmatprep.subr.mxu0 0.0
    %200 = vmatpush2.msra.mxu0 0.0
    %201 = vmatprep.subr.mxu0 0.0
    %202 = vmatpush2.msra.mxu0 0.0
    %203 = vmatprep.subr.mxu0 0.0
    %204 = vmatpush2.msra.mxu0 0.0
    %205 = vmatprep.subr.mxu0 0.0
    %206 = vmatpush2.msra.mxu0 0.0
    %207 = vmatprep.subr.mxu0 0.0
    %208 = vmatpush2.msra.mxu0 0.0
    %209 = vmatprep.subr.mxu0 0.0
    %210 = vmatpush2.msra.mxu0 0.0
    %211 = vmatprep.subr.mxu0 0.0
    %212 = vmatpush2.msra.mxu0 0.0
    %213 = vmatprep.subr.mxu0 0.0
    %214 = vmatpush2.msra.mxu0 0.0
    %215 = vmatprep.subr.mxu0 0.0
    %216 = vmatpush2.msra.mxu0 0.0
    %217 = vmatprep.subr.mxu0 0.0
    %218 = vmatpush2.msra.mxu0 0.0
    %219 = vmatprep.subr.mxu0 0.0
    %220 = vmatpush2.msra.mxu0 0.0
    %221 = vmatprep.subr.mxu0 0.0
    %222 = vmatpush2.msra.mxu0 0.0
    %223 = vmatprep.subr.mxu0 0.0
    %224 = vmatpush2.msra.mxu0 0.0
    %225 = vmatprep.subr.mxu0 0.0
    %226 = vmatpush2.msra.mxu0 0.0
    %227 = vmatprep.subr.mxu0 0.0
    %228 = vmatpush2.msra.mxu0 0.0
    %229 = vmatprep.mubr.f32.mxu0 0.0
    %230 = vmatmul.mubr.f32.gmra.mxu0 %v163
    %v231 = vpop.f32.mrf.mxu0
    %v232 = vadd.f32 %v161, %v231
    %v233 = vpop.f32.mrf.mxu0
    %234 = vdwg.mxu0
    %v235 = vld [vmem:[%s0] sm:$0x1]
    %v236 = vlaneseq
    %v237 = vshrl.u32 %v236, 7
    %v238 = vadd.s32 %v237, 8
    %v239 = vlaneseq
    %v240 = vshrl.u32 %v239, 7
    %v241 = vsub.s32 0, %v240
    %v242 = vrot.slane %v235, %v241
    %vm243 = vcmp.eq.s32.totalorder %v242, %v237
    %vm244 = vcmp.eq.s32.totalorder %v242, %v238
    %v245 = vsel %vm243, 1, 0
    %v246 = vsel %vm244, 1, 0
    %v247 = vcvt.s32.f32 %v245
    %v248 = vcvt.s32.f32 %v246
    %vm249 = vcmask 130048
    %v251 = vsel %vm249, %v232, 0
    %253 = vmatprep.subr.mxu0 0.0
    %254 = vmatpush1.msra.mxu0 0.0
    %255 = vmatprep.subr.mxu0 0.0
    %256 = vmatpush1.msra.mxu0 0.0
    %257 = vmatprep.subr.mxu0 0.0
    %258 = vmatpush1.msra.mxu0 0.0
    %259 = vmatprep.subr.mxu0 0.0
    %260 = vmatpush1.msra.mxu0 0.0
    %261 = vmatprep.subr.mxu0 0.0
    %262 = vmatpush1.msra.mxu0 0.0
    %263 = vmatprep.subr.mxu0 0.0
    %264 = vmatpush1.msra.mxu0 0.0
    %265 = vmatprep.subr.mxu0 0.0
    %266 = vmatpush1.msra.mxu0 0.0
    %267 = vmatprep.subr.mxu0 0.0
    %268 = vmatpush1.msra.mxu0 0.0
    %269 = vmatprep.subr.mxu0 0.0
    %270 = vmatpush1.msra.mxu0 0.0
    %271 = vmatprep.subr.mxu0 0.0
    %272 = vmatpush1.msra.mxu0 0.0
    %273 = vmatprep.subr.mxu0 0.0
    %274 = vmatpush1.msra.mxu0 0.0
    %275 = vmatprep.subr.mxu0 0.0
    %276 = vmatpush1.msra.mxu0 0.0
    %277 = vmatprep.subr.mxu0 0.0
    %278 = vmatpush1.msra.mxu0 0.0
    %279 = vmatprep.subr.mxu0 0.0
    %280 = vmatpush1.msra.mxu0 0.0
    %281 = vmatprep.subr.mxu0 0.0
    %282 = vmatpush1.msra.mxu0 %v248
    %283 = vmatprep.subr.mxu0 0.0
    %284 = vmatpush1.msra.mxu0 %v247
    %285 = vmatprep.subr.mxu0 0.0
    %286 = vmatpush2.msra.mxu0 0.0
    %287 = vmatprep.subr.mxu0 0.0
    %288 = vmatpush2.msra.mxu0 0.0
    %289 = vmatprep.subr.mxu0 0.0
    %290 = vmatpush2.msra.mxu0 0.0
    %291 = vmatprep.subr.mxu0 0.0
    %292 = vmatpush2.msra.mxu0 0.0
    %293 = vmatprep.subr.mxu0 0.0
    %294 = vmatpush2.msra.mxu0 0.0
    %295 = vmatprep.subr.mxu0 0.0
    %296 = vmatpush2.msra.mxu0 0.0
    %297 = vmatprep.subr.mxu0 0.0
    %298 = vmatpush2.msra.mxu0 0.0
    %299 = vmatprep.subr.mxu0 0.0
    %300 = vmatpush2.msra.mxu0 0.0
    %301 = vmatprep.subr.mxu0 0.0
    %302 = vmatpush2.msra.mxu0 0.0
    %303 = vmatprep.subr.mxu0 0.0
    %304 = vmatpush2.msra.mxu0 0.0
    %305 = vmatprep.subr.mxu0 0.0
    %306 = vmatpush2.msra.mxu0 0.0
    %307 = vmatprep.subr.mxu0 0.0
    %308 = vmatpush2.msra.mxu0 0.0
    %309 = vmatprep.subr.mxu0 0.0
    %310 = vmatpush2.msra.mxu0 0.0
    %311 = vmatprep.subr.mxu0 0.0
    %312 = vmatpush2.msra.mxu0 0.0
    %313 = vmatprep.subr.mxu0 0.0
    %314 = vmatpush2.msra.mxu0 0.0
    %315 = vmatprep.subr.mxu0 0.0
    %316 = vmatpush2.msra.mxu0 0.0
    %317 = vmatprep.mubr.f32.mxu0 0.0
    %318 = vmatmul.mubr.f32.gmra.mxu0 %v251
    %v319 = vpop.f32.mrf.mxu0
    %v320 = vadd.f32 0.0, %v319
    %v321 = vpop.f32.mrf.mxu0
    %322 = vdwg.mxu0
    %323 = vst [vmem:[#allocation3] sm:$0x1] %v320
    // Predicated region
    $region26: #{tpu_custom_call.1} parent=1 // pred_check
      _
    $region27: #{tpu_custom_call.1} parent=1 // pred_check_branch
      %325 = sbr.rel (0) target = $region29
    $region28: #{tpu_custom_call.1} parent=1 // pred_region
      %s327 = ssub.s32 16, 16
      %328 = vsyncadd [#allocation4], %s327
      %s330 = sshll.u32 [#allocation3], 4
      %s331 = int_to_ptr.vmem [resolvable:$true] %s330
      %333 = dma.vmem_to_hbm [thread:$0]  %s331, 16, %s6, [#allocation4]
    $region29: #{tpu_custom_call.1} parent=1 // pred_fallthru
      _
    // Predicated region
    $region30: #{tpu_custom_call.1} parent=1 // pred_check
      _
    $region31: #{tpu_custom_call.1} parent=1 // pred_check_branch
      %335 = sbr.rel (0) target = $region33
    $region32: #{tpu_custom_call.1} parent=1 // pred_region
      %336 = dma.done [#allocation4], 16
    $region33: #{tpu_custom_call.1} parent=1 // pred_fallthru
      _
    %337 = vsyncpa [#allocation4], 1

</llo_original>
